<compile_context>
chip_gen: v6e
topology: v6e:2x2x1
jax: 0.10.0
libtpu: 0.0.40
codegen_flags: <defaults>
</compile_context>

<pallas_src>
import math

import jax
import jax.numpy as jnp
from jax import lax
from jax.experimental import pallas as pl
from jax.experimental.pallas import tpu as pltpu

_LANES = 128
_MAX_TILE_ROWS = 8192            # 8192 x 128 f32 = 4 MiB per input block
_MIN_SPLIT_ROWS = 512            # min rows per chunk before splitting across 2 TCs
_VMEM_DATA_BUDGET = 20 * 1024 * 1024
_VMEM_LIMIT_BYTES = 32 * 1024 * 1024


def _bce_elem(x, y):
    # Numerically stable BCE-with-logits (same formula PyTorch uses):
    #   max(x, 0) - x*y + log1p(exp(-|x|))
    return jnp.maximum(x, 0.0) - x * y + jnp.log1p(jnp.exp(-jnp.abs(x)))


def _make_bulk_kernel(rows_bulk, tile_rows, tiles_per_chunk):
    """Sum of per-element BCE losses over a (rows_bulk, 128) array, per chunk."""

    def kernel(x_ref, t_ref, o_ref, acc_ref):
        c = pl.program_id(0)     # "parallel" chunk (megacore shard on 2-TC chips)
        k = pl.program_id(1)     # "arbitrary" reduction step within the chunk

        @pl.when(k == 0)
        def _init():
            acc_ref[...] = jnp.zeros_like(acc_ref)

        x = x_ref[...].astype(jnp.float32)            # in-kernel upcast (cheap)
        # y in {0,1}, so x*y == where(t != 0, x, 0): one compare + one select.
        xy = jnp.where(t_ref[...] != 0, x, 0.0)
        loss = jnp.maximum(x, 0.0) - xy + jnp.log1p(jnp.exp(-jnp.abs(x)))

        tile_idx = c * tiles_per_chunk + k
        row_start = tile_idx * tile_rows
        is_full = row_start + tile_rows <= rows_bulk

        # Hot path: every row of the tile is valid -> pure VALU accumulate.
        @pl.when(is_full)
        def _acc_full():
            acc_ref[...] += loss

        # Cold path (at most one partial tile + possibly one empty clamped tile
        # per call): mask out rows past the end of the bulk array.
        @pl.when(jnp.logical_not(is_full))
        def _acc_partial():
            rid = lax.broadcasted_iota(jnp.int32, (tile_rows, _LANES), 0)
            acc_ref[...] += jnp.where(rid < rows_bulk - row_start, loss, 0.0)

        @pl.when(k == pl.num_programs(1) - 1)
        def _finalize():
            col = jnp.sum(acc_ref[...], axis=0, keepdims=True)    # (1, 128)
            o_ref[0] = jnp.sum(col, axis=1, keepdims=True)        # (1, 1) raw sum

    return kernel


def _bulk_sum_pallas(x2d, t2d, rows_bulk):
    """Launch the reduction kernel over a lane-dense (rows_bulk, 128) layout."""
    x_item = x2d.dtype.itemsize
    t_item = t2d.dtype.itemsize
    # double-buffered inputs + single f32 accumulator, per row of 128 lanes
    bytes_per_row = _LANES * (2 * (x_item + t_item) + 4)
    vmem_rows = max(32, (_VMEM_DATA_BUDGET // bytes_per_row) // 32 * 32)
    max_tile_rows = min(_MAX_TILE_ROWS, vmem_rows)

    num_chunks = 2 if rows_bulk >= 2 * _MIN_SPLIT_ROWS else 1
    rows_per_chunk = pl.cdiv(rows_bulk, num_chunks)
    # multiple of 32 -> valid sublane tiling for f32/bf16/int8 blocks alike
    tile_rows = min(max_tile_rows, ((rows_per_chunk + 31) // 32) * 32)
    if tile_rows > rows_bulk:
        tile_rows = rows_bulk        # single block == whole array (equal-dim rule)

    num_tiles = pl.cdiv(rows_bulk, tile_rows)
    tiles_per_chunk = pl.cdiv(num_tiles, num_chunks)
    last_tile = num_tiles - 1
    need_clamp = num_chunks * tiles_per_chunk > num_tiles

    def in_map(c, k):
        t = c * tiles_per_chunk + k
        if need_clamp:
            # Keep the DMA of a fully-empty trailing tile in bounds; the kernel
            # masks its contribution to zero (row_start >= rows_bulk).
            t = jnp.minimum(t, last_tile)
        return (t, 0)

    partials = pl.pallas_call(
        _make_bulk_kernel(rows_bulk, tile_rows, tiles_per_chunk),
        out_shape=jax.ShapeDtypeStruct((num_chunks, 1, 1), jnp.float32),
        grid_spec=pltpu.PrefetchScalarGridSpec(
            num_scalar_prefetch=0,
            grid=(num_chunks, tiles_per_chunk),
            in_specs=[
                pl.BlockSpec((tile_rows, _LANES), in_map),
                pl.BlockSpec((tile_rows, _LANES), in_map),
            ],
            out_specs=pl.BlockSpec((1, 1, 1), lambda c, k: (c, 0, 0)),
            scratch_shapes=[pltpu.VMEM((tile_rows, _LANES), jnp.float32)],
        ),
        compiler_params=pltpu.CompilerParams(
            dimension_semantics=("parallel", "arbitrary"),
            vmem_limit_bytes=_VMEM_LIMIT_BYTES),
    )(x2d, t2d)
    return jnp.sum(partials)


@jax.jit
def my_bce_with_logit(outputs, targets):
    """JAX/Pallas equivalent of MyBCEWithLogit.forward(outputs, targets)."""
    x = outputs
    if x.ndim >= 1 and x.shape[-1] == 1:          # mirrors outputs.squeeze(dim=-1)
        x = jnp.squeeze(x, axis=-1)
    assert x.shape == targets.shape, "after squeeze, logits and targets must match"

    n = int(math.prod(x.shape))
    if n == 0:
        return jnp.float32(jnp.nan)               # torch mean over zero elements

    x_flat = x.reshape(-1)                        # metadata-only (contiguous input)
    t_flat = targets.reshape(-1)

    rem = n % _LANES
    n_bulk = n - rem
    rows_bulk = n_bulk // _LANES

    bulk = jnp.float32(0.0)
    if rows_bulk > 0:
        if rem == 0:
            # Lane-aligned: the 2-D view is a free bitcast reshape - zero extra
            # HBM passes; targets go in NATIVE dtype (kernel does `!= 0`).
            x2d = x_flat.reshape(rows_bulk, _LANES)
            t2d = t_flat.reshape(rows_bulk, _LANES)
        else:
            # Ragged count: XLA materializes the aligned prefix once.  Narrow the
            # targets to int8 during that unavoidable pass (1 B/elem kernel read).
            x2d = x_flat[:n_bulk].reshape(rows_bulk, _LANES)
            t2d = (t_flat[:n_bulk] != 0).astype(jnp.int8).reshape(rows_bulk, _LANES)
        bulk = _bulk_sum_pallas(x2d, t2d, rows_bulk)

    tail = jnp.float32(0.0)
    if rem > 0:
        # <128 leftover elements: plain JAX, negligible cost.
        xt = x_flat[n_bulk:].astype(jnp.float32)
        yt = (t_flat[n_bulk:] != 0).astype(jnp.float32)
        tail = jnp.sum(_bce_elem(xt, yt))

    return (bulk + tail) / n


def _reference(outputs, targets):
    x = outputs
    if x.ndim >= 1 and x.shape[-1] == 1:
        x = jnp.squeeze(x, axis=-1)
    x = x.astype(jnp.float32)
    y = (targets != 0).astype(jnp.float32)
    return jnp.mean(jnp.maximum(x, 0.0) - x * y + jnp.log1p(jnp.exp(-jnp.abs(x))))


if __name__ == "__main__":
    key = jax.random.PRNGKey(0)
    k1, k2, k3, k4 = jax.random.split(key, 4)

    # Small, lane-aligned case (zero-copy path): (batch, 1) logits, (batch,) labels.
    batch_s = 512
    outputs_s = jax.random.normal(k1, (batch_s, 1), dtype=jnp.float32)
    targets_s = jax.random.randint(k2, (batch_s,), minval=0, maxval=3, dtype=jnp.int32)
    loss_s = my_bce_with_logit(outputs_s, targets_s)
    jax.block_until_ready(loss_s)
    ref_s = _reference(outputs_s, targets_s)
    assert jnp.allclose(loss_s, ref_s, atol=1e-6, rtol=1e-5), (loss_s, ref_s)

    # Ragged, multi-tile case: exercises the 2-chunk parallel split, in-chunk
    # accumulation over k, the masked partial tile, the clamped empty tile and
    # the <128-element pure-JAX tail.
    batch_l = 3_000_013
    outputs_l = jax.random.normal(k3, (batch_l, 1), dtype=jnp.float32)
    targets_l = jax.random.randint(k4, (batch_l,), minval=0, maxval=3, dtype=jnp.int32)
    loss_l = my_bce_with_logit(outputs_l, targets_l)
    jax.block_until_ready(loss_l)
    ref_l = _reference(outputs_l, targets_l)
    assert jnp.allclose(loss_l, ref_l, atol=1e-6, rtol=5e-5), (loss_l, ref_l)

    print("KERNEL_OK")
</pallas_src>

<mosaic_0001>
module attributes {stable_mosaic.version = 11 : i64} {
  func.func @kernel(%arg0: i32, %arg1: i32, %arg2: memref<4x128xf32, #tpu.memory_space<vmem>>, %arg3: memref<4x128xi32, #tpu.memory_space<vmem>>, %arg4: memref<1x1x1xf32, #tpu.memory_space<vmem>>, %arg5: memref<4x128xf32, #tpu.memory_space<vmem>>) attributes {dimension_semantics = [#tpu.dimension_semantics<parallel>, #tpu.dimension_semantics<arbitrary>], iteration_bounds = array<i64: 1, 1>, scalar_prefetch = 0 : i64, scratch_operands = 1 : i64, tpu.core_type = #tpu.core_type<tc>, window_params = [{transform_indices = @transform_0, window_bounds = array<i64: 4, 128>}, {transform_indices = @transform_1, window_bounds = array<i64: 4, 128>}, {transform_indices = @transform_2, window_bounds = array<i64: 1, 1, 1>}]} {
    %c0_i32 = arith.constant 0 : i32
    %0 = arith.cmpi eq, %arg1, %c0_i32 : i32
    %1 = arith.extui %0 : i1 to i32
    %c0_i32_0 = arith.constant 0 : i32
    %2 = arith.cmpi ne, %1, %c0_i32_0 : i32
    scf.if %2 {
      %cst_13 = arith.constant 0.000000e+00 : f32
      %31 = vector.broadcast %cst_13 : f32 to vector<4x128xf32>
      %c0_14 = arith.constant 0 : index
      %c0_15 = arith.constant 0 : index
      %32 = vector.load %arg5[%c0_14, %c0_15] : memref<4x128xf32, #tpu.memory_space<vmem>>, vector<4x128xf32>
      tpu.vector_store %arg5[%c0_14, %c0_15], %31 {strides = array<i32>} : memref<4x128xf32, #tpu.memory_space<vmem>>, vector<4x128xf32>,
    } else {
    }
    %c0 = arith.constant 0 : index
    %c0_1 = arith.constant 0 : index
    %3 = vector.load %arg2[%c0, %c0_1] : memref<4x128xf32, #tpu.memory_space<vmem>>, vector<4x128xf32>
    %c0_2 = arith.constant 0 : index
    %c0_3 = arith.constant 0 : index
    %4 = vector.load %arg3[%c0_2, %c0_3] : memref<4x128xi32, #tpu.memory_space<vmem>>, vector<4x128xi32>
    %c0_i32_4 = arith.constant 0 : i32
    %5 = vector.broadcast %c0_i32_4 : i32 to vector<4x128xi32>
    %6 = arith.cmpi ne, %4, %5 : vector<4x128xi32>
    %cst = arith.constant 0.000000e+00 : f32
    %7 = vector.broadcast %cst : f32 to vector<4x128xf32>
    %8 = arith.select %6, %3, %7 : vector<4x128xi1>, vector<4x128xf32>
    %cst_5 = arith.constant 0.000000e+00 : f32
    %9 = vector.broadcast %cst_5 : f32 to vector<4x128xf32>
    %10 = arith.maximumf %3, %9 : vector<4x128xf32>
    %11 = arith.subf %10, %8 : vector<4x128xf32>
    %12 = math.absf %3 : vector<4x128xf32>
    %cst_6 = arith.constant 0.000000e+00 : f32
    %13 = vector.broadcast %cst_6 : f32 to vector<4x128xf32>
    %14 = arith.subf %13, %12 : vector<4x128xf32>
    %15 = math.exp %14 : vector<4x128xf32>
    %16 = math.log1p %15 : vector<4x128xf32>
    %17 = arith.addf %11, %16 : vector<4x128xf32>
    %c1_i32 = arith.constant 1 : i32
    %18 = arith.muli %arg0, %c1_i32 : i32
    %19 = arith.addi %18, %arg1 : i32
    %c4_i32 = arith.constant 4 : i32
    %20 = arith.muli %19, %c4_i32 : i32
    %c4_i32_7 = arith.constant 4 : i32
    %21 = arith.addi %20, %c4_i32_7 : i32
    %c4_i32_8 = arith.constant 4 : i32
    %22 = arith.cmpi sle, %21, %c4_i32_8 : i32
    %23 = arith.extui %22 : i1 to i32
    %c0_i32_9 = arith.constant 0 : i32
    %24 = arith.cmpi ne, %23, %c0_i32_9 : i32
    scf.if %24 {
      %c0_13 = arith.constant 0 : index
      %c0_14 = arith.constant 0 : index
      %31 = vector.load %arg5[%c0_13, %c0_14] : memref<4x128xf32, #tpu.memory_space<vmem>>, vector<4x128xf32>
      %32 = arith.addf %31, %17 : vector<4x128xf32>
      %c0_15 = arith.constant 0 : index
      %c0_16 = arith.constant 0 : index
      %33 = vector.load %arg5[%c0_15, %c0_16] : memref<4x128xf32, #tpu.memory_space<vmem>>, vector<4x128xf32>
      tpu.vector_store %arg5[%c0_15, %c0_16], %32 {strides = array<i32>} : memref<4x128xf32, #tpu.memory_space<vmem>>, vector<4x128xf32>,
    } else {
    }
    %true = arith.constant true
    %25 = arith.xori %22, %true : i1
    %26 = arith.extui %25 : i1 to i32
    %c0_i32_10 = arith.constant 0 : i32
    %27 = arith.cmpi ne, %26, %c0_i32_10 : i32
    scf.if %27 {
      %31 = tpu.iota {dimensions = array<i32: 0>} : vector<4x128xi32>
      %c0_13 = arith.constant 0 : index
      %c0_14 = arith.constant 0 : index
      %32 = vector.load %arg5[%c0_13, %c0_14] : memref<4x128xf32, #tpu.memory_space<vmem>>, vector<4x128xf32>
      %c4_i32_15 = arith.constant 4 : i32
      %33 = arith.subi %c4_i32_15, %20 : i32
      %34 = vector.broadcast %33 : i32 to vector<4x128xi32>
      %35 = arith.cmpi slt, %31, %34 : vector<4x128xi32>
      %cst_16 = arith.constant 0.000000e+00 : f32
      %36 = vector.broadcast %cst_16 : f32 to vector<4x128xf32>
      %37 = arith.select %35, %17, %36 : vector<4x128xi1>, vector<4x128xf32>
      %38 = arith.addf %32, %37 : vector<4x128xf32>
      %c0_17 = arith.constant 0 : index
      %c0_18 = arith.constant 0 : index
      %39 = vector.load %arg5[%c0_17, %c0_18] : memref<4x128xf32, #tpu.memory_space<vmem>>, vector<4x128xf32>
      tpu.vector_store %arg5[%c0_17, %c0_18], %38 {strides = array<i32>} : memref<4x128xf32, #tpu.memory_space<vmem>>, vector<4x128xf32>,
    } else {
    }
    %c0_i32_11 = arith.constant 0 : i32
    %28 = arith.cmpi eq, %arg1, %c0_i32_11 : i32
    %29 = arith.extui %28 : i1 to i32
    %c0_i32_12 = arith.constant 0 : i32
    %30 = arith.cmpi ne, %29, %c0_i32_12 : i32
    scf.if %30 {
      %c0_13 = arith.constant 0 : index
      %c0_14 = arith.constant 0 : index
      %31 = vector.load %arg5[%c0_13, %c0_14] : memref<4x128xf32, #tpu.memory_space<vmem>>, vector<4x128xf32>
      %cst_15 = arith.constant dense<0.000000e+00> : vector<128xf32>
      %32 = vector.multi_reduction <add>, %31, %cst_15 [0] : vector<4x128xf32> to vector<128xf32>
      %33 = vector.shape_cast %32 : vector<128xf32> to vector<1x128xf32>
      %cst_16 = arith.constant dense<0.000000e+00> : vector<1xf32>
      %34 = vector.multi_reduction <add>, %33, %cst_16 [1] : vector<1x128xf32> to vector<1xf32>
      %35 = vector.shape_cast %34 : vector<1xf32> to vector<1x1xf32>
      %c0_17 = arith.constant 0 : index
      %c0_18 = arith.constant 0 : index
      %c0_19 = arith.constant 0 : index
      %36 = vector.load %arg4[%c0_17, %c0_18, %c0_19] : memref<1x1x1xf32, #tpu.memory_space<vmem>>, vector<1x1x1xf32>
      %37 = vector.shape_cast %36 : vector<1x1x1xf32> to vector<1x1xf32>
      %38 = vector.shape_cast %35 : vector<1x1xf32> to vector<1x1x1xf32>
      tpu.vector_store %arg4[%c0_17, %c0_18, %c0_19], %38 {strides = array<i32>} : memref<1x1x1xf32, #tpu.memory_space<vmem>>, vector<1x1x1xf32>,
    } else {
    }
    return
  }
  func.func @transform_0(%arg0: i32, %arg1: i32) -> (i32, i32) {
    %c1_i32 = arith.constant 1 : i32
    %0 = arith.muli %arg0, %c1_i32 : i32
    %1 = arith.addi %0, %arg1 : i32
    %c0_i32 = arith.constant 0 : i32
    %c0_i32_0 = arith.constant 0 : i32
    return %1, %c0_i32 : i32, i32
  }
  func.func @transform_1(%arg0: i32, %arg1: i32) -> (i32, i32) {
    %c1_i32 = arith.constant 1 : i32
    %0 = arith.muli %arg0, %c1_i32 : i32
    %1 = arith.addi %0, %arg1 : i32
    %c0_i32 = arith.constant 0 : i32
    %c0_i32_0 = arith.constant 0 : i32
    return %1, %c0_i32 : i32, i32
  }
  func.func @transform_2(%arg0: i32, %arg1: i32) -> (i32, i32, i32) {
    %c0_i32 = arith.constant 0 : i32
    %c0_i32_0 = arith.constant 0 : i32
    %c0_i32_1 = arith.constant 0 : i32
    return %arg0, %c0_i32, %c0_i32_0 : i32, i32, i32
  }
}

</mosaic_0001>

<llo_original>
// kernel: my_bce_with_logit.1
$region0: #{my_bce_with_logit.1}
  #allocation0 [shape = 'u32[]', space=smem, size = 0x4, offset = 0x4, fixed_abs, tag = 'smem constant byte address 0x4 - core index']
  #allocation1 [shape = 'u32[144,128]{1,0:T(1,128)}', space=vmem, size = 0x12000, scoped, tag = 'internal scratch']
  #allocation2 [shape = 'f32[4,128]{1,0:T(4,128)}', space=vmem, size = 0x800, scoped, tag = 'scratch operand']
  %s0 = inlined_call_operand.hbm [shape: f32[4,128], index: 0, kind: input, shape index: {}]
  %s1 = inlined_call_operand.vmem [shape: s32[4,128], index: 1, kind: input, shape index: {}]
  %s2 = inlined_call_operand.hbm [shape: f32[1,1,1], index: 2, kind: output, shape index: {}]
  %s3 = sld [smem:[#allocation0]]
  $region38: #{my_bce_with_logit.1} parent=0
    _
  %s5 = ssub.s32 1, %s3
  %s6 = scalar_select 0, %s5, %s3
  $region1: #{my_bce_with_logit.1} parent=0
    #allocation3 [shape = 'u8[2048]{0}', space=vmem, size = 0x800, scoped, tag = 'input window, operand 0, single buffered']
    #allocation4 [shape = 's32[1]{0}', space=sflag, size = 0x4, scoped, tag = 'scoped memory for my_bce_with_logit.1']
    #allocation5 [shape = 's32[1]{0}', space=sflag, size = 0x4, scoped, tag = 'scoped memory for my_bce_with_logit.1']
    #allocation6 [shape = 'u8[512]{0}', space=vmem, size = 0x400, scoped, tag = 'output window, operand 0, single buffered']
    %7 = vsyncpa [#allocation4], 0
    %8 = vsyncpa [#allocation5], 0
    // Predicated region
    $region2: #{my_bce_with_logit.1} parent=1 // pred_check
      _
    $region3: #{my_bce_with_logit.1} parent=1 // pred_check_branch
      %10 = sbr.rel (0) target = $region5
    $region4: #{my_bce_with_logit.1} parent=1 // pred_region
      %s11 = sadd.s32 0, 0
      %s13 = ssub.s32 64, 64
      %14 = vsyncadd [#allocation4], %s13
      %s15 = smul.addr %s11, 64
      %s16 = scalar_lea.hbm %s0, %s15
      %s18 = sshll.u32 [#allocation3], 4
      %s19 = int_to_ptr.vmem [resolvable:$true] %s18
      %21 = dma.hbm_to_vmem [thread:$0]  %s16, 64, %s19, [#allocation4]
    $region5: #{my_bce_with_logit.1} parent=1 // pred_fallthru
      _
    // Predicated region
    $region6: #{my_bce_with_logit.1} parent=1 // pred_check
      _
    $region7: #{my_bce_with_logit.1} parent=1 // pred_check_branch
      %23 = sbr.rel (0) target = $region9
    $region8: #{my_bce_with_logit.1} parent=1 // pred_region
      %s24 = sadd.s32 0, 0
      %p25 = scmp.lt.s32.totalorder %s24, 0
      %s26 = scalar_select %p25, %s24, 0
      %s27 = smul.addr %s26, 4
      %s28 = scalar_lea.vmem %s1, %s27
      %s29 = sadd.s32 0, 0
    $region9: #{my_bce_with_logit.1} parent=1 // pred_fallthru
      _
    // Predicated region
    $region10: #{my_bce_with_logit.1} parent=1 // pred_check
      _
    $region11: #{my_bce_with_logit.1} parent=1 // pred_check_branch
      %31 = sbr.rel (0) target = $region13
    $region12: #{my_bce_with_logit.1} parent=1 // pred_region
      %32 = dma.done [#allocation4], 64
    $region13: #{my_bce_with_logit.1} parent=1 // pred_fallthru
      _
    %s33 = sadd.s32 0, 0
    %p34 = scmp.lt.s32.totalorder %s33, 0
    %s35 = scalar_select %p34, %s33, 0
    %s36 = smul.addr %s35, 4
    %s37 = scalar_lea.vmem %s1, %s36
    %s38 = sadd.s32 0, 0
    %s39 = sadd.s32 0, 0
    %p40 = scmp.lt.s32.totalorder %s39, 0
    %s41 = scalar_select %p40, %s39, 0
    %s42 = smul.addr %s41, 4
    %s43 = scalar_lea.vmem %s1, %s42
    %s44 = sadd.s32 0, 0
    %p45 = scmp.eq.s32.totalorder 0, 0
    // Predicated region
    $region14: #{my_bce_with_logit.1} parent=1 // pred_check
      %p46 = pneg %p45
    $region15: #{my_bce_with_logit.1} parent=1 // pred_check_branch
      %48 = sbr.rel (%p46) target = $region17
    $region16: #{my_bce_with_logit.1} parent=1 // pred_region
      %49 = vst [vmem:[#allocation2] sm:$0xf] 0.0
    $region17: #{my_bce_with_logit.1} parent=1 // pred_fallthru
      _
    %v50 = vld [vmem:[#allocation3] sm:$0xf]
    %v51 = vld [vmem:[%s43] sm:$0xf]
    %vm52 = vcmp.ne.s32.totalorder %v51, 0
    %v53 = vsel %vm52, %v50, 0.0
    %v54 = vmax.f32 %v50, 0.0
    %v55 = vsub.f32 %v54, %v53
    %v56 = vand.u32 2147483647, %v50
    %v57 = vsub.f32 0.0, %v56
    %v58 = vmul.f32 %v57, 1.442695
    %v59 = vpow.pop %v58
    %v60 = vadd.f32 %v59, 1.0
    %v61 = vlog2.pop %v60
    %v62 = vmul.f32 %v61, 0.6931472
    %v63 = vmul.f32 -0.5, %v59
    %v64 = vadd.f32 %v63, 1.0
    %v65 = vmul.f32 %v64, %v59
    %v66 = vand.u32 2147483647, %v59
    %vm67 = vcmp.lt.f32.partialorder %v66, 0.0004427343
    %v68 = vsel %vm67, %v65, %v62
    %v69 = vadd.f32 %v55, %v68
    %s70 = sadd.s32 0, 0
    %s71 = smul.u32 %s70, 4
    %s72 = sadd.s32 %s71, 4
    %p73 = scmp.le.s32.totalorder %s72, 4
    // Predicated region
    $region18: #{my_bce_with_logit.1} parent=1 // pred_check
      %p74 = pneg %p73
    $region19: #{my_bce_with_logit.1} parent=1 // pred_check_branch
      %76 = sbr.rel (%p74) target = $region21
    $region20: #{my_bce_with_logit.1} parent=1 // pred_region
      %v77 = vld [vmem:[#allocation2] sm:$0xf]
      %v78 = vadd.f32 %v77, %v69
      %79 = vst [vmem:[#allocation2] sm:$0xf] %v78
    $region21: #{my_bce_with_logit.1} parent=1 // pred_fallthru
      _
    %p80 = scmp.gt.s32.totalorder %s72, 4
    // Predicated region
    $region22: #{my_bce_with_logit.1} parent=1 // pred_check
      %p81 = pneg %p80
    $region23: #{my_bce_with_logit.1} parent=1 // pred_check_branch
      %83 = sbr.rel (%p81) target = $region25
    $region24: #{my_bce_with_logit.1} parent=1 // pred_region
      %v84 = vlaneseq
      %v85 = vshrl.u32 %v84, 7
      %v86 = vld [vmem:[#allocation2] sm:$0xf]
      %s87 = ssub.s32 4, %s71
      %v88 = vstv %s87
      %vm89 = vcmp.lt.s32.totalorder %v85, %v88
      %v90 = vsel %vm89, %v69, 0.0
      %v91 = vadd.f32 %v86, %v90
      %92 = vst [vmem:[#allocation2] sm:$0xf] %v91
    $region25: #{my_bce_with_logit.1} parent=1 // pred_fallthru
      _
    // Predicated region
    $region26: #{my_bce_with_logit.1} parent=1 // pred_check
      %p93 = pneg %p45
    $region27: #{my_bce_with_logit.1} parent=1 // pred_check_branch
      %95 = sbr.rel (%p93) target = $region29
    $region28: #{my_bce_with_logit.1} parent=1 // pred_region
      %v96 = vld [vmem:[#allocation2] sm:$0xf]
      %vm97 = vcmask 1043456
      %v98 = vsel %vm97, %v96, 0.0
      %v99 = vrot.slane %v98, 4
      %v100 = vadd.f32 %v98, %v99
      %v101 = vrot.slane %v100, 2
      %v102 = vadd.f32 %v100, %v101
      %v103 = vrot.slane %v102, 1
      %v104 = vadd.f32 %v102, %v103
      %105 = vadd.xlane.f32.xlu0 %v104
      %v106 = vpop.xlane.xlu0 %105
      %vm107 = vcmask 0
      %108 = vst.msk [vmem:[#allocation6] sm:$0x1] %vm107, %v106
    $region29: #{my_bce_with_logit.1} parent=1 // pred_fallthru
      _
    // Predicated region
    $region30: #{my_bce_with_logit.1} parent=1 // pred_check
      _
    $region31: #{my_bce_with_logit.1} parent=1 // pred_check_branch
      %110 = sbr.rel (0) target = $region33
    $region32: #{my_bce_with_logit.1} parent=1 // pred_region
      %s112 = ssub.s32 16, 16
      %113 = vsyncadd [#allocation5], %s112
      %s115 = sshll.u32 [#allocation6], 4
      %s116 = int_to_ptr.vmem [resolvable:$true] %s115
      %118 = dma.vmem_to_hbm [thread:$0]  %s116, 16, %s2, [#allocation5]
    $region33: #{my_bce_with_logit.1} parent=1 // pred_fallthru
      _
    // Predicated region
    $region34: #{my_bce_with_logit.1} parent=1 // pred_check
      _
    $region35: #{my_bce_with_logit.1} parent=1 // pred_check_branch
      %120 = sbr.rel (0) target = $region37
    $region36: #{my_bce_with_logit.1} parent=1 // pred_region
      %121 = dma.done [#allocation5], 16
    $region37: #{my_bce_with_logit.1} parent=1 // pred_fallthru
      _
    %122 = vsyncpa [#allocation4], 1
    %123 = vsyncpa [#allocation5], 1

</llo_original>
